<compile_context>
chip_gen: v5e
topology: v5e:2x2
jax: 0.10.0
libtpu: 0.0.40
codegen_flags: <defaults>
</compile_context>

<pallas_src>
import functools

import jax
import jax.numpy as jnp
from jax import lax
from jax.experimental import pallas as pl
from jax.experimental.pallas import tpu as pltpu

LANE = 128


def _round_up(n, m):
    return ((n + m - 1) // m) * m


def _dense_vae_encoder_kernel(x_ref, w1_ref, b1_ref, w2_ref, b2_ref,
                              w3_ref, b3_ref, out_ref, *, latent_dim):
    """Fused 3-layer MLP + softplus on the std half.

    x_ref:   (tb, D)        f32 (cast to the matmul dtype in-kernel)
    wN_ref:  (in_p, out_p)  matmul dtype, zero-padded to lane multiples
    bN_ref:  (1, out_p)     f32
    out_ref: (tb, out_p)    f32; [:, :L]=mean, [:, L:2L]=softplus(std_pre),
                            [:, 2L:]=padding (discarded by the wrapper)
    """
    mm_dtype = w1_ref.dtype

    # Layer 1: bf16 operands on the MXU, f32 accumulation; cast hides under MXU.
    h = jnp.dot(x_ref[...].astype(mm_dtype), w1_ref[...],
                preferred_element_type=jnp.float32)
    h = jnp.maximum(h + b1_ref[...], 0.0)          # f32 elementwise

    # Layer 2
    h = jnp.dot(h.astype(mm_dtype), w2_ref[...],
                preferred_element_type=jnp.float32)
    h = jnp.maximum(h + b2_ref[...], 0.0)

    # Output layer (no activation)
    o = jnp.dot(h.astype(mm_dtype), w3_ref[...],
                preferred_element_type=jnp.float32)
    o = o + b3_ref[...]

    # Softplus only on columns >= latent_dim (std half; padded cols are
    # don't-care). Full-width column mask keeps the store a single dense,
    # unmasked, lane-aligned write.
    col = lax.broadcasted_iota(jnp.int32, o.shape, dimension=1)
    is_std = col >= latent_dim
    # PyTorch Softplus(beta=1, threshold=20): x if x > 20 else log1p(exp(x))
    softplus = jnp.where(o > 20.0, o, jnp.log1p(jnp.exp(jnp.minimum(o, 20.0))))
    out_ref[...] = jnp.where(is_std, softplus, o).astype(out_ref.dtype)


def _num_tensorcores():
    """Best-effort query of TensorCores per chip (2 on v7x, 1 on v5e/v6e)."""
    try:
        info = pltpu.get_tpu_info()
        for attr in ("num_cores", "core_count", "tensorcore_count",
                     "num_tensorcores", "cores_per_chip"):
            n = getattr(info, attr, None)
            if isinstance(n, int) and 1 <= n <= 8:
                return n
    except Exception:
        pass
    try:
        n = getattr(jax.devices()[0], "num_cores", None)
        if isinstance(n, int) and 1 <= n <= 8:
            return n
    except Exception:
        pass
    return 1


def _buffered_supported():
    """Feature-detect BlockSpec(pipeline_mode=pl.Buffered(n)) (no broad try/except at call time)."""
    if not hasattr(pl, "Buffered"):
        return False
    try:
        pl.BlockSpec((8, LANE), lambda i: (0, 0), pipeline_mode=pl.Buffered(1))
        return True
    except TypeError:
        return False


def prepare_params(params, latent_dim, matmul_dtype=jnp.bfloat16):
    """One-time prep (keep OUT of the per-call path): zero-pad hidden/output
    dims to multiples of 128 lanes and pre-cast weights to the matmul dtype.
    Exact for ReLU MLPs: padded hidden units stay 0 and padded weight rows
    contribute nothing downstream; padded output columns are sliced off."""
    w1, b1 = params["w1"], params["b1"]
    w2, b2 = params["w2"], params["b2"]
    w3, b3 = params["w3"], params["b3"]
    D, H1 = w1.shape
    H2 = w2.shape[1]
    two_l = w3.shape[1]
    assert two_l == 2 * latent_dim
    h1p, h2p, out_p = (_round_up(n, LANE) for n in (H1, H2, two_l))

    def pad2(a, rows, cols):
        return jnp.pad(a, ((0, rows - a.shape[0]), (0, cols - a.shape[1])))

    return {
        "w1": pad2(w1, D, h1p).astype(matmul_dtype),
        "b1": pad2(b1, 1, h1p).astype(jnp.float32),
        "w2": pad2(w2, h1p, h2p).astype(matmul_dtype),
        "b2": pad2(b2, 1, h2p).astype(jnp.float32),
        "w3": pad2(w3, h2p, out_p).astype(matmul_dtype),
        "b3": pad2(b3, 1, out_p).astype(jnp.float32),
    }


def _pick_batch_tile(B, min_tile, n_cores, row_budget):
    candidates = [c for c in (1024, 512, 256, 128, 64, 32, 16, 8)
                  if min_tile <= c <= row_budget]
    if n_cores >= 2:
        # v7x: even number of grid steps >= 2 so ("parallel",) shards the
        # batch axis across both TensorCores.
        for c in candidates:
            if B % c == 0 and (B // c) >= 2 and (B // c) % 2 == 0:
                return c
        half = B // 2
        if B % 2 == 0 and half % min_tile == 0 and half <= row_budget:
            return half
    # Single TensorCore (or no clean even split): fewest grid steps possible.
    if B <= row_budget and B <= 1024:
        return B
    for c in candidates:
        if B % c == 0:
            return c
    return B


def dense_vae_encoder(x, prepared, *, latent_dim, batch_tile=None,
                      single_buffer_weights=None):
    """DenseVAEEncoder forward with a fused Pallas TPU kernel.

    x: (B, input_dim) float32
    prepared: output of prepare_params() (padded + pre-cast weights/biases)
    returns: (mean (B, latent), std (B, latent))
    """
    B, D = x.shape
    w1, b1 = prepared["w1"], prepared["b1"]
    w2, b2 = prepared["w2"], prepared["b2"]
    w3, b3 = prepared["w3"], prepared["b3"]
    assert w1.shape[0] == D
    h1p, h2p, out_p = w1.shape[1], w2.shape[1], w3.shape[1]
    assert out_p >= 2 * latent_dim

    nbytes = lambda a: a.size * a.dtype.itemsize
    weight_bytes = sum(nbytes(a) for a in (w1, b1, w2, b2, w3, b3))

    # Single-buffer resident weights only when double-buffering them would
    # meaningfully eat into VMEM (matters first on v7x's 64 MiB VMEM).
    if single_buffer_weights is None:
        single_buffer_weights = weight_bytes > (16 << 20)
    use_single = bool(single_buffer_weights) and _buffered_supported()

    # Batch tile: x / out blocks are f32 -> 8-row sublane granularity.
    min_tile = 8
    # Rough per-row live bytes (f32 activations + bf16 matmul copies).
    act_row_bytes = 4 * (D + h1p + h2p + out_p) + 2 * (D + h1p + h2p)
    row_budget = max(min_tile, (12 << 20) // max(act_row_bytes, 1))
    if batch_tile is None:
        tb = _pick_batch_tile(B, min_tile, _num_tensorcores(), row_budget)
    else:
        tb = batch_tile
    if tb != B:
        assert B % tb == 0, f"batch_tile={tb} must divide batch={B}"
        assert tb % min_tile == 0, f"batch_tile={tb} must be a multiple of {min_tile}"
    grid = (B // tb,)

    # Weights/biases: constant block index -> fetched once, resident in VMEM.
    def resident(shape):
        if use_single:
            return pl.BlockSpec(shape, lambda i: (0, 0),
                                pipeline_mode=pl.Buffered(1))
        return pl.BlockSpec(shape, lambda i: (0, 0))

    buf_count = 1 if use_single else 2
    vmem_needed = (weight_bytes * buf_count
                   + 2 * tb * D * x.dtype.itemsize     # x tiles, double-buffered
                   + 2 * tb * out_p * 4)               # out tiles, double-buffered
    vmem_limit = int(min(max(vmem_needed * 5 // 4 + (2 << 20), 16 << 20), 56 << 20))

    cost = pl.CostEstimate(
        flops=2 * B * (D * h1p + h1p * h2p + h2p * out_p),
        transcendentals=2 * B * out_p,   # exp + log1p evaluated on full width
        bytes_accessed=nbytes(x) + weight_bytes + B * out_p * 4,
    )

    kernel = functools.partial(_dense_vae_encoder_kernel, latent_dim=latent_dim)
    combined = pl.pallas_call(
        kernel,
        out_shape=jax.ShapeDtypeStruct((B, out_p), jnp.float32),
        grid_spec=pltpu.PrefetchScalarGridSpec(
            num_scalar_prefetch=0,
            grid=grid,
            in_specs=[
                pl.BlockSpec((tb, D), lambda i: (i, 0)),   # x, batch-tiled, f32
                resident(w1.shape), resident(b1.shape),
                resident(w2.shape), resident(b2.shape),
                resident(w3.shape), resident(b3.shape),
            ],
            out_specs=pl.BlockSpec((tb, out_p), lambda i: (i, 0)),
        ),
        compiler_params=pltpu.CompilerParams(
            dimension_semantics=("parallel",),
            vmem_limit_bytes=vmem_limit),
        cost_estimate=cost,
    )(x, w1, b1, w2, b2, w3, b3)

    mean = combined[:, :latent_dim]
    std = combined[:, latent_dim:2 * latent_dim]
    return mean.astype(x.dtype), std.astype(x.dtype)


def init_params(key, input_dim, hidden_dims, latent_dim, dtype=jnp.float32):
    """Deterministic synthetic parameter init (Linear-like fan-in scaling)."""
    dims = [input_dim, *hidden_dims, 2 * latent_dim]
    params = {}
    keys = jax.random.split(key, len(dims) - 1)
    for idx, (d_in, d_out) in enumerate(zip(dims[:-1], dims[1:]), start=1):
        kw, kb = jax.random.split(keys[idx - 1])
        bound = 1.0 / jnp.sqrt(d_in)
        params[f"w{idx}"] = jax.random.uniform(
            kw, (d_in, d_out), dtype, minval=-bound, maxval=bound)
        params[f"b{idx}"] = jax.random.uniform(
            kb, (1, d_out), dtype, minval=-bound, maxval=bound)
    return params


def reference_forward(x, params, latent_dim, matmul_dtype=jnp.bfloat16):
    """Pure-JAX reference using the same precision recipe as the kernel
    (bf16 MXU operands, f32 accumulation and elementwise math).
    Note: this differs from a strict f32 PyTorch forward at bf16 precision."""
    mm = lambda a, w: jnp.dot(a.astype(matmul_dtype), w.astype(matmul_dtype),
                              preferred_element_type=jnp.float32)
    h = jnp.maximum(mm(x, params["w1"]) + params["b1"], 0.0)
    h = jnp.maximum(mm(h, params["w2"]) + params["b2"], 0.0)
    o = mm(h, params["w3"]) + params["b3"]
    mean = o[:, :latent_dim]
    s = o[:, latent_dim:]
    std = jnp.where(s > 20.0, s, jnp.log1p(jnp.exp(jnp.minimum(s, 20.0))))
    return mean, std


if __name__ == "__main__":
    # Small, module-consistent shapes: x is (batch, input_dim).
    batch = 128
    input_dim = 32
    hidden_dims = (64, 64)
    latent_dim = 16

    key = jax.random.PRNGKey(0)
    kx, kp = jax.random.split(key)
    x = jax.random.normal(kx, (batch, input_dim), dtype=jnp.float32)
    params = init_params(kp, input_dim, hidden_dims, latent_dim)

    # One-time weight prep (lane padding + bf16 cast), outside the call path.
    prepared = prepare_params(params, latent_dim)

    mean, std = dense_vae_encoder(x, prepared, latent_dim=latent_dim)
    jax.block_until_ready((mean, std))

    # Sanity-check against a pure-JAX reference with matching precision.
    mean_ref, std_ref = reference_forward(x, params, latent_dim)
    assert mean.shape == (batch, latent_dim)
    assert std.shape == (batch, latent_dim)
    assert jnp.allclose(mean, mean_ref, atol=5e-3, rtol=5e-3)
    assert jnp.allclose(std, std_ref, atol=5e-3, rtol=5e-3)
    assert bool(jnp.all(std > 0.0))   # softplus output must be positive

    print("KERNEL_OK")
</pallas_src>

<mosaic_0001>
module attributes {stable_mosaic.version = 11 : i64} {
  func.func @_dense_vae_encoder_kernel(%arg0: i32, %arg1: memref<128x32xf32, #tpu.memory_space<vmem>>, %arg2: memref<32x128xbf16, #tpu.memory_space<vmem>>, %arg3: memref<1x128xf32, #tpu.memory_space<vmem>>, %arg4: memref<128x128xbf16, #tpu.memory_space<vmem>>, %arg5: memref<1x128xf32, #tpu.memory_space<vmem>>, %arg6: memref<128x128xbf16, #tpu.memory_space<vmem>>, %arg7: memref<1x128xf32, #tpu.memory_space<vmem>>, %arg8: memref<128x128xf32, #tpu.memory_space<vmem>>) attributes {dimension_semantics = [#tpu.dimension_semantics<parallel>], iteration_bounds = array<i64: 1>, scalar_prefetch = 0 : i64, scratch_operands = 0 : i64, tpu.core_type = #tpu.core_type<tc>, window_params = [{transform_indices = @transform_0, window_bounds = array<i64: 128, 32>}, {pipeline_mode = #tpu.pipeline_mode<synchronous>, transform_indices = @transform_1, window_bounds = array<i64: 32, 128>}, {pipeline_mode = #tpu.pipeline_mode<synchronous>, transform_indices = @transform_2, window_bounds = array<i64: 1, 128>}, {pipeline_mode = #tpu.pipeline_mode<synchronous>, transform_indices = @transform_3, window_bounds = array<i64: 128, 128>}, {pipeline_mode = #tpu.pipeline_mode<synchronous>, transform_indices = @transform_4, window_bounds = array<i64: 1, 128>}, {pipeline_mode = #tpu.pipeline_mode<synchronous>, transform_indices = @transform_5, window_bounds = array<i64: 128, 128>}, {pipeline_mode = #tpu.pipeline_mode<synchronous>, transform_indices = @transform_6, window_bounds = array<i64: 1, 128>}, {transform_indices = @transform_7, window_bounds = array<i64: 128, 128>}]} {
    %c0 = arith.constant 0 : index
    %c0_0 = arith.constant 0 : index
    %0 = vector.load %arg1[%c0, %c0_0] : memref<128x32xf32, #tpu.memory_space<vmem>>, vector<128x32xf32>
    %1 = arith.truncf %0 : vector<128x32xf32> to vector<128x32xbf16>
    %c0_1 = arith.constant 0 : index
    %c0_2 = arith.constant 0 : index
    %2 = vector.load %arg2[%c0_1, %c0_2] : memref<32x128xbf16, #tpu.memory_space<vmem>>, vector<32x128xbf16>
    %cst = arith.constant dense<0.000000e+00> : vector<128x128xf32>
    %3 = tpu.matmul %1, %2, %cst {dimension_numbers = #tpu.dot_dimension_numbers<[1], [0], [0], [1], [0, 0, 1, 1], [], []>} : vector<128x32xbf16>, vector<32x128xbf16>, vector<128x128xf32> -> vector<128x128xf32>
    %c0_3 = arith.constant 0 : index
    %c0_4 = arith.constant 0 : index
    %4 = vector.load %arg3[%c0_3, %c0_4] : memref<1x128xf32, #tpu.memory_space<vmem>>, vector<1x128xf32>
    %5 = vector.broadcast %4 : vector<1x128xf32> to vector<128x128xf32>
    %6 = arith.addf %3, %5 : vector<128x128xf32>
    %cst_5 = arith.constant 0.000000e+00 : f32
    %7 = vector.broadcast %cst_5 : f32 to vector<128x128xf32>
    %8 = arith.maximumf %6, %7 : vector<128x128xf32>
    %9 = arith.truncf %8 : vector<128x128xf32> to vector<128x128xbf16>
    %c0_6 = arith.constant 0 : index
    %c0_7 = arith.constant 0 : index
    %10 = vector.load %arg4[%c0_6, %c0_7] : memref<128x128xbf16, #tpu.memory_space<vmem>>, vector<128x128xbf16>
    %cst_8 = arith.constant dense<0.000000e+00> : vector<128x128xf32>
    %11 = tpu.matmul %9, %10, %cst_8 {dimension_numbers = #tpu.dot_dimension_numbers<[1], [0], [0], [1], [0, 0, 1, 1], [], []>} : vector<128x128xbf16>, vector<128x128xbf16>, vector<128x128xf32> -> vector<128x128xf32>
    %c0_9 = arith.constant 0 : index
    %c0_10 = arith.constant 0 : index
    %12 = vector.load %arg5[%c0_9, %c0_10] : memref<1x128xf32, #tpu.memory_space<vmem>>, vector<1x128xf32>
    %13 = vector.broadcast %12 : vector<1x128xf32> to vector<128x128xf32>
    %14 = arith.addf %11, %13 : vector<128x128xf32>
    %cst_11 = arith.constant 0.000000e+00 : f32
    %15 = vector.broadcast %cst_11 : f32 to vector<128x128xf32>
    %16 = arith.maximumf %14, %15 : vector<128x128xf32>
    %17 = arith.truncf %16 : vector<128x128xf32> to vector<128x128xbf16>
    %c0_12 = arith.constant 0 : index
    %c0_13 = arith.constant 0 : index
    %18 = vector.load %arg6[%c0_12, %c0_13] : memref<128x128xbf16, #tpu.memory_space<vmem>>, vector<128x128xbf16>
    %cst_14 = arith.constant dense<0.000000e+00> : vector<128x128xf32>
    %19 = tpu.matmul %17, %18, %cst_14 {dimension_numbers = #tpu.dot_dimension_numbers<[1], [0], [0], [1], [0, 0, 1, 1], [], []>} : vector<128x128xbf16>, vector<128x128xbf16>, vector<128x128xf32> -> vector<128x128xf32>
    %c0_15 = arith.constant 0 : index
    %c0_16 = arith.constant 0 : index
    %20 = vector.load %arg7[%c0_15, %c0_16] : memref<1x128xf32, #tpu.memory_space<vmem>>, vector<1x128xf32>
    %21 = vector.broadcast %20 : vector<1x128xf32> to vector<128x128xf32>
    %22 = arith.addf %19, %21 : vector<128x128xf32>
    %23 = tpu.iota {dimensions = array<i32: 1>} : vector<128x128xi32>
    %c16_i32 = arith.constant 16 : i32
    %24 = vector.broadcast %c16_i32 : i32 to vector<128x128xi32>
    %25 = arith.cmpi sge, %23, %24 : vector<128x128xi32>
    %cst_17 = arith.constant 2.000000e+01 : f32
    %26 = vector.broadcast %cst_17 : f32 to vector<128x128xf32>
    %27 = arith.cmpf ogt, %22, %26 : vector<128x128xf32>
    %cst_18 = arith.constant 2.000000e+01 : f32
    %28 = vector.broadcast %cst_18 : f32 to vector<128x128xf32>
    %29 = arith.minimumf %22, %28 : vector<128x128xf32>
    %30 = math.exp %29 : vector<128x128xf32>
    %31 = math.log1p %30 : vector<128x128xf32>
    %32 = arith.select %27, %22, %31 : vector<128x128xi1>, vector<128x128xf32>
    %33 = arith.select %25, %32, %22 : vector<128x128xi1>, vector<128x128xf32>
    %c0_19 = arith.constant 0 : index
    %c0_20 = arith.constant 0 : index
    %34 = vector.load %arg8[%c0_19, %c0_20] : memref<128x128xf32, #tpu.memory_space<vmem>>, vector<128x128xf32>
    tpu.vector_store %arg8[%c0_19, %c0_20], %33 {strides = array<i32>} : memref<128x128xf32, #tpu.memory_space<vmem>>, vector<128x128xf32>,
    return
  }
  func.func @transform_0(%arg0: i32) -> (i32, i32) {
    %c0_i32 = arith.constant 0 : i32
    %c0_i32_0 = arith.constant 0 : i32
    return %arg0, %c0_i32 : i32, i32
  }
  func.func @transform_1(%arg0: i32) -> (i32, i32) {
    %c0_i32 = arith.constant 0 : i32
    %c0_i32_0 = arith.constant 0 : i32
    %c0_i32_1 = arith.constant 0 : i32
    return %c0_i32, %c0_i32_0 : i32, i32
  }
  func.func @transform_2(%arg0: i32) -> (i32, i32) {
    %c0_i32 = arith.constant 0 : i32
    %c0_i32_0 = arith.constant 0 : i32
    %c0_i32_1 = arith.constant 0 : i32
    return %c0_i32, %c0_i32_0 : i32, i32
  }
  func.func @transform_3(%arg0: i32) -> (i32, i32) {
    %c0_i32 = arith.constant 0 : i32
    %c0_i32_0 = arith.constant 0 : i32
    %c0_i32_1 = arith.constant 0 : i32
    return %c0_i32, %c0_i32_0 : i32, i32
  }
  func.func @transform_4(%arg0: i32) -> (i32, i32) {
    %c0_i32 = arith.constant 0 : i32
    %c0_i32_0 = arith.constant 0 : i32
    %c0_i32_1 = arith.constant 0 : i32
    return %c0_i32, %c0_i32_0 : i32, i32
  }
  func.func @transform_5(%arg0: i32) -> (i32, i32) {
    %c0_i32 = arith.constant 0 : i32
    %c0_i32_0 = arith.constant 0 : i32
    %c0_i32_1 = arith.constant 0 : i32
    return %c0_i32, %c0_i32_0 : i32, i32
  }
  func.func @transform_6(%arg0: i32) -> (i32, i32) {
    %c0_i32 = arith.constant 0 : i32
    %c0_i32_0 = arith.constant 0 : i32
    %c0_i32_1 = arith.constant 0 : i32
    return %c0_i32, %c0_i32_0 : i32, i32
  }
  func.func @transform_7(%arg0: i32) -> (i32, i32) {
    %c0_i32 = arith.constant 0 : i32
    %c0_i32_0 = arith.constant 0 : i32
    return %arg0, %c0_i32 : i32, i32
  }
}

</mosaic_0001>

<llo_original>
// kernel: tpu_custom_call.1
$region0: #{tpu_custom_call.1}
  #allocation0 [shape = 'u32[]', space=smem, size = 0x4, offset = 0x4, fixed_abs, tag = 'smem constant byte address 0x4 - core index']
  #allocation1 [shape = 'u32[72,128]{1,0:T(1,128)}', space=vmem, size = 0x9000, scoped, tag = 'internal scratch']
  %s0 = inlined_call_operand.vmem [shape: f32[128,32], index: 0, kind: input, shape index: {}]
  %s1 = inlined_call_operand.vmem [shape: bf16[32,128], index: 1, kind: input, shape index: {}]
  %s2 = inlined_call_operand.vmem [shape: f32[1,128], index: 2, kind: input, shape index: {}]
  %s3 = inlined_call_operand.vmem [shape: bf16[128,128], index: 3, kind: input, shape index: {}]
  %s4 = inlined_call_operand.vmem [shape: f32[1,128], index: 4, kind: input, shape index: {}]
  %s5 = inlined_call_operand.vmem [shape: bf16[128,128], index: 5, kind: input, shape index: {}]
  %s6 = inlined_call_operand.vmem [shape: f32[1,128], index: 6, kind: input, shape index: {}]
  %s7 = inlined_call_operand.hbm [shape: f32[128,128], index: 7, kind: output, shape index: {}]
  %s8 = sld [smem:[#allocation0]]
  $region38: #{tpu_custom_call.1} parent=0
    _
  %s10 = ssub.s32 1, %s8
  %s11 = scalar_select 0, %s10, %s8
  $region1: #{tpu_custom_call.1} parent=0
    #allocation2 [shape = 'u8[65536]{0}', space=vmem, size = 0x10000, scoped, tag = 'output window, operand 0, single buffered']
    #allocation3 [shape = 's32[1]{0}', space=sflag, size = 0x4, scoped, tag = 'scoped memory for tpu_custom_call.1']
    %12 = vsyncpa [#allocation3], 0
    // Predicated region
    $region2: #{tpu_custom_call.1} parent=1 // pred_check
      _
    $region3: #{tpu_custom_call.1} parent=1 // pred_check_branch
      %14 = sbr.rel (0) target = $region5
    $region4: #{tpu_custom_call.1} parent=1 // pred_region
      _
    $region5: #{tpu_custom_call.1} parent=1 // pred_fallthru
      _
    // Predicated region
    $region6: #{tpu_custom_call.1} parent=1 // pred_check
      _
    $region7: #{tpu_custom_call.1} parent=1 // pred_check_branch
      %16 = sbr.rel (0) target = $region9
    $region8: #{tpu_custom_call.1} parent=1 // pred_region
      _
    $region9: #{tpu_custom_call.1} parent=1 // pred_fallthru
      _
    // Predicated region
    $region10: #{tpu_custom_call.1} parent=1 // pred_check
      _
    $region11: #{tpu_custom_call.1} parent=1 // pred_check_branch
      %18 = sbr.rel (0) target = $region13
    $region12: #{tpu_custom_call.1} parent=1 // pred_region
      _
    $region13: #{tpu_custom_call.1} parent=1 // pred_fallthru
      _
    // Predicated region
    $region14: #{tpu_custom_call.1} parent=1 // pred_check
      _
    $region15: #{tpu_custom_call.1} parent=1 // pred_check_branch
      %20 = sbr.rel (0) target = $region17
    $region16: #{tpu_custom_call.1} parent=1 // pred_region
      _
    $region17: #{tpu_custom_call.1} parent=1 // pred_fallthru
      _
    // Predicated region
    $region18: #{tpu_custom_call.1} parent=1 // pred_check
      _
    $region19: #{tpu_custom_call.1} parent=1 // pred_check_branch
      %22 = sbr.rel (0) target = $region21
    $region20: #{tpu_custom_call.1} parent=1 // pred_region
      _
    $region21: #{tpu_custom_call.1} parent=1 // pred_fallthru
      _
    // Predicated region
    $region22: #{tpu_custom_call.1} parent=1 // pred_check
      _
    $region23: #{tpu_custom_call.1} parent=1 // pred_check_branch
      %24 = sbr.rel (0) target = $region25
    $region24: #{tpu_custom_call.1} parent=1 // pred_region
      _
    $region25: #{tpu_custom_call.1} parent=1 // pred_fallthru
      _
    // Predicated region
    $region26: #{tpu_custom_call.1} parent=1 // pred_check
      _
    $region27: #{tpu_custom_call.1} parent=1 // pred_check_branch
      %26 = sbr.rel (0) target = $region29
    $region28: #{tpu_custom_call.1} parent=1 // pred_region
      _
    $region29: #{tpu_custom_call.1} parent=1 // pred_fallthru
      _
    %v28 = vld [vmem:[%s0] sm:$0xff]
    %v29 = vld [vmem:[%s0 + $0x8] sm:$0xff]
    %v30 = vld [vmem:[%s0 + $0x10] sm:$0xff]
    %v31 = vld [vmem:[%s0 + $0x18] sm:$0xff]
    %v32 = vld [vmem:[%s0 + $0x20] sm:$0xff]
    %v33 = vld [vmem:[%s0 + $0x28] sm:$0xff]
    %v34 = vld [vmem:[%s0 + $0x30] sm:$0xff]
    %v35 = vld [vmem:[%s0 + $0x38] sm:$0xff]
    %v36 = vld [vmem:[%s0 + $0x40] sm:$0xff]
    %v37 = vld [vmem:[%s0 + $0x48] sm:$0xff]
    %v38 = vld [vmem:[%s0 + $0x50] sm:$0xff]
    %v39 = vld [vmem:[%s0 + $0x58] sm:$0xff]
    %v40 = vld [vmem:[%s0 + $0x60] sm:$0xff]
    %v41 = vld [vmem:[%s0 + $0x68] sm:$0xff]
    %v42 = vld [vmem:[%s0 + $0x70] sm:$0xff]
    %v43 = vld [vmem:[%s0 + $0x78] sm:$0xff]
    %v44 = vpack.c.bf16 %v29, %v28
    %v45 = vpack.c.bf16 %v31, %v30
    %v46 = vpack.c.bf16 %v33, %v32
    %v47 = vpack.c.bf16 %v35, %v34
    %v48 = vpack.c.bf16 %v37, %v36
    %v49 = vpack.c.bf16 %v39, %v38
    %v50 = vpack.c.bf16 %v41, %v40
    %v51 = vpack.c.bf16 %v43, %v42
    %v52 = vld [vmem:[%s1] sm:$0xf]
    %v53 = vld [vmem:[%s1 + $0x4] sm:$0xf]
    %v54 = vld [vmem:[%s1 + $0x8] sm:$0xf]
    %v55 = vld [vmem:[%s1 + $0xc] sm:$0xf]
    %v56 = vld [vmem:[%s2] sm:$0x1]
    %v58 = vperm.slane %v56, 0
    %v64 = vunpack.c.l.b16 %v52
    %v65 = vunpack.c.l.b16 %v53
    %v66 = vunpack.c.l.b16 %v54
    %v67 = vunpack.c.l.b16 %v55
    %v68 = vpack.c.b16 %v65, %v64
    %v69 = vpack.c.b16 %v67, %v66
    %vm72 = vcmask 261120
    %v74 = vsel %vm72, %v44, 0
    %v77 = vsel %vm72, %v45, 0
    %v80 = vsel %vm72, %v46, 0
    %v83 = vsel %vm72, %v47, 0
    %v86 = vsel %vm72, %v48, 0
    %v89 = vsel %vm72, %v49, 0
    %v92 = vsel %vm72, %v50, 0
    %v95 = vsel %vm72, %v51, 0
    %97 = vmatpush.bf16.msra.mxu0 0
    %98 = vmatpush.bf16.msra.mxu0 0
    %99 = vmatpush.bf16.msra.mxu0 0
    %100 = vmatpush.bf16.msra.mxu0 0
    %101 = vmatpush.bf16.msra.mxu0 0
    %102 = vmatpush.bf16.msra.mxu0 0
    %103 = vmatpush.bf16.msra.mxu0 %v69
    %104 = vmatpush.bf16.msra.mxu0 %v68
    %105 = vmatmul.bf16.gmra.mxu0 %v74
    %v106 = vpop.f32.mrf.mxu0
    %v107 = vadd.f32 %v58, %v106
    %v108 = vpop.f32.mrf.mxu0
    %v109 = vadd.f32 %v58, %v108
    %110 = vmatmul.bf16.gmra.mxu0 %v77
    %v111 = vpop.f32.mrf.mxu0
    %v112 = vadd.f32 %v58, %v111
    %v113 = vpop.f32.mrf.mxu0
    %v114 = vadd.f32 %v58, %v113
    %115 = vmatmul.bf16.gmra.mxu0 %v80
    %v116 = vpop.f32.mrf.mxu0
    %v117 = vadd.f32 %v58, %v116
    %v118 = vpop.f32.mrf.mxu0
    %v119 = vadd.f32 %v58, %v118
    %120 = vmatmul.bf16.gmra.mxu0 %v83
    %v121 = vpop.f32.mrf.mxu0
    %v122 = vadd.f32 %v58, %v121
    %v123 = vpop.f32.mrf.mxu0
    %v124 = vadd.f32 %v58, %v123
    %125 = vmatmul.bf16.gmra.mxu0 %v86
    %v126 = vpop.f32.mrf.mxu0
    %v127 = vadd.f32 %v58, %v126
    %v128 = vpop.f32.mrf.mxu0
    %v129 = vadd.f32 %v58, %v128
    %130 = vmatmul.bf16.gmra.mxu0 %v89
    %v131 = vpop.f32.mrf.mxu0
    %v132 = vadd.f32 %v58, %v131
    %v133 = vpop.f32.mrf.mxu0
    %v134 = vadd.f32 %v58, %v133
    %135 = vmatmul.bf16.gmra.mxu0 %v92
    %v136 = vpop.f32.mrf.mxu0
    %v137 = vadd.f32 %v58, %v136
    %v138 = vpop.f32.mrf.mxu0
    %v139 = vadd.f32 %v58, %v138
    %140 = vmatmul.bf16.gmra.mxu0 %v95
    %v141 = vpop.f32.mrf.mxu0
    %v142 = vadd.f32 %v58, %v141
    %v143 = vpop.f32.mrf.mxu0
    %v144 = vadd.f32 %v58, %v143
    %145 = vdwg.mxu0
    %v146 = vmax.f32 %v107, 0.0
    %v147 = vmax.f32 %v109, 0.0
    %v148 = vmax.f32 %v112, 0.0
    %v149 = vmax.f32 %v114, 0.0
    %v150 = vmax.f32 %v117, 0.0
    %v151 = vmax.f32 %v119, 0.0
    %v152 = vmax.f32 %v122, 0.0
    %v153 = vmax.f32 %v124, 0.0
    %v154 = vmax.f32 %v127, 0.0
    %v155 = vmax.f32 %v129, 0.0
    %v156 = vmax.f32 %v132, 0.0
    %v157 = vmax.f32 %v134, 0.0
    %v158 = vmax.f32 %v137, 0.0
    %v159 = vmax.f32 %v139, 0.0
    %v160 = vmax.f32 %v142, 0.0
    %v161 = vmax.f32 %v144, 0.0
    %v162 = vpack.c.bf16 %v147, %v146
    %v163 = vpack.c.bf16 %v149, %v148
    %v164 = vpack.c.bf16 %v151, %v150
    %v165 = vpack.c.bf16 %v153, %v152
    %v166 = vpack.c.bf16 %v155, %v154
    %v167 = vpack.c.bf16 %v157, %v156
    %v168 = vpack.c.bf16 %v159, %v158
    %v169 = vpack.c.bf16 %v161, %v160
    %v170 = vld [vmem:[%s3] sm:$0xf]
    %v171 = vld [vmem:[%s3 + $0x4] sm:$0xf]
    %v172 = vld [vmem:[%s3 + $0x8] sm:$0xf]
    %v173 = vld [vmem:[%s3 + $0xc] sm:$0xf]
    %v174 = vld [vmem:[%s3 + $0x10] sm:$0xf]
    %v175 = vld [vmem:[%s3 + $0x14] sm:$0xf]
    %v176 = vld [vmem:[%s3 + $0x18] sm:$0xf]
    %v177 = vld [vmem:[%s3 + $0x1c] sm:$0xf]
    %v178 = vld [vmem:[%s3 + $0x20] sm:$0xf]
    %v179 = vld [vmem:[%s3 + $0x24] sm:$0xf]
    %v180 = vld [vmem:[%s3 + $0x28] sm:$0xf]
    %v181 = vld [vmem:[%s3 + $0x2c] sm:$0xf]
    %v182 = vld [vmem:[%s3 + $0x30] sm:$0xf]
    %v183 = vld [vmem:[%s3 + $0x34] sm:$0xf]
    %v184 = vld [vmem:[%s3 + $0x38] sm:$0xf]
    %v185 = vld [vmem:[%s3 + $0x3c] sm:$0xf]
    %v186 = vld [vmem:[%s4] sm:$0x1]
    %v188 = vperm.slane %v186, 0
    %v206 = vunpack.c.l.b16 %v170
    %v207 = vunpack.c.l.b16 %v171
    %v208 = vunpack.c.l.b16 %v172
    %v209 = vunpack.c.l.b16 %v173
    %v210 = vunpack.c.l.b16 %v174
    %v211 = vunpack.c.l.b16 %v175
    %v212 = vunpack.c.l.b16 %v176
    %v213 = vunpack.c.l.b16 %v177
    %v214 = vunpack.c.l.b16 %v178
    %v215 = vunpack.c.l.b16 %v179
    %v216 = vunpack.c.l.b16 %v180
    %v217 = vunpack.c.l.b16 %v181
    %v218 = vunpack.c.l.b16 %v182
    %v219 = vunpack.c.l.b16 %v183
    %v220 = vunpack.c.l.b16 %v184
    %v221 = vunpack.c.l.b16 %v185
    %v222 = vpack.c.b16 %v207, %v206
    %v223 = vpack.c.b16 %v209, %v208
    %v224 = vpack.c.b16 %v211, %v210
    %v225 = vpack.c.b16 %v213, %v212
    %v226 = vpack.c.b16 %v215, %v214
    %v227 = vpack.c.b16 %v217, %v216
    %v228 = vpack.c.b16 %v219, %v218
    %v229 = vpack.c.b16 %v221, %v220
    %238 = vmatpush.bf16.msra.mxu0 %v229
    %239 = vmatpush.bf16.msra.mxu0 %v228
    %240 = vmatpush.bf16.msra.mxu0 %v227
    %241 = vmatpush.bf16.msra.mxu0 %v226
    %242 = vmatpush.bf16.msra.mxu0 %v225
    %243 = vmatpush.bf16.msra.mxu0 %v224
    %244 = vmatpush.bf16.msra.mxu0 %v223
    %245 = vmatpush.bf16.msra.mxu0 %v222
    %246 = vmatmul.bf16.gmra.mxu0 %v162
    %v247 = vpop.f32.mrf.mxu0
    %v248 = vadd.f32 %v188, %v247
    %v249 = vpop.f32.mrf.mxu0
    %v250 = vadd.f32 %v188, %v249
    %251 = vmatmul.bf16.gmra.mxu0 %v163
    %v252 = vpop.f32.mrf.mxu0
    %v253 = vadd.f32 %v188, %v252
    %v254 = vpop.f32.mrf.mxu0
    %v255 = vadd.f32 %v188, %v254
    %256 = vmatmul.bf16.gmra.mxu0 %v164
    %v257 = vpop.f32.mrf.mxu0
    %v258 = vadd.f32 %v188, %v257
    %v259 = vpop.f32.mrf.mxu0
    %v260 = vadd.f32 %v188, %v259
    %261 = vmatmul.bf16.gmra.mxu0 %v165
    %v262 = vpop.f32.mrf.mxu0
    %v263 = vadd.f32 %v188, %v262
    %v264 = vpop.f32.mrf.mxu0
    %v265 = vadd.f32 %v188, %v264
    %266 = vmatmul.bf16.gmra.mxu0 %v166
    %v267 = vpop.f32.mrf.mxu0
    %v268 = vadd.f32 %v188, %v267
    %v269 = vpop.f32.mrf.mxu0
    %v270 = vadd.f32 %v188, %v269
    %271 = vmatmul.bf16.gmra.mxu0 %v167
    %v272 = vpop.f32.mrf.mxu0
    %v273 = vadd.f32 %v188, %v272
    %v274 = vpop.f32.mrf.mxu0
    %v275 = vadd.f32 %v188, %v274
    %276 = vmatmul.bf16.gmra.mxu0 %v168
    %v277 = vpop.f32.mrf.mxu0
    %v278 = vadd.f32 %v188, %v277
    %v279 = vpop.f32.mrf.mxu0
    %v280 = vadd.f32 %v188, %v279
    %281 = vmatmul.bf16.gmra.mxu0 %v169
    %v282 = vpop.f32.mrf.mxu0
    %v283 = vadd.f32 %v188, %v282
    %v284 = vpop.f32.mrf.mxu0
    %v285 = vadd.f32 %v188, %v284
    %286 = vdwg.mxu0
    %v287 = vmax.f32 %v248, 0.0
    %v288 = vmax.f32 %v250, 0.0
    %v289 = vmax.f32 %v253, 0.0
    %v290 = vmax.f32 %v255, 0.0
    %v291 = vmax.f32 %v258, 0.0
    %v292 = vmax.f32 %v260, 0.0
    %v293 = vmax.f32 %v263, 0.0
    %v294 = vmax.f32 %v265, 0.0
    %v295 = vmax.f32 %v268, 0.0
    %v296 = vmax.f32 %v270, 0.0
    %v297 = vmax.f32 %v273, 0.0
    %v298 = vmax.f32 %v275, 0.0
    %v299 = vmax.f32 %v278, 0.0
    %v300 = vmax.f32 %v280, 0.0
    %v301 = vmax.f32 %v283, 0.0
    %v302 = vmax.f32 %v285, 0.0
    %v303 = vpack.c.bf16 %v288, %v287
    %v304 = vpack.c.bf16 %v290, %v289
    %v305 = vpack.c.bf16 %v292, %v291
    %v306 = vpack.c.bf16 %v294, %v293
    %v307 = vpack.c.bf16 %v296, %v295
    %v308 = vpack.c.bf16 %v298, %v297
    %v309 = vpack.c.bf16 %v300, %v299
    %v310 = vpack.c.bf16 %v302, %v301
    %v311 = vld [vmem:[%s5] sm:$0xf]
    %v312 = vld [vmem:[%s5 + $0x4] sm:$0xf]
    %v313 = vld [vmem:[%s5 + $0x8] sm:$0xf]
    %v314 = vld [vmem:[%s5 + $0xc] sm:$0xf]
    %v315 = vld [vmem:[%s5 + $0x10] sm:$0xf]
    %v316 = vld [vmem:[%s5 + $0x14] sm:$0xf]
    %v317 = vld [vmem:[%s5 + $0x18] sm:$0xf]
    %v318 = vld [vmem:[%s5 + $0x1c] sm:$0xf]
    %v319 = vld [vmem:[%s5 + $0x20] sm:$0xf]
    %v320 = vld [vmem:[%s5 + $0x24] sm:$0xf]
    %v321 = vld [vmem:[%s5 + $0x28] sm:$0xf]
    %v322 = vld [vmem:[%s5 + $0x2c] sm:$0xf]
    %v323 = vld [vmem:[%s5 + $0x30] sm:$0xf]
    %v324 = vld [vmem:[%s5 + $0x34] sm:$0xf]
    %v325 = vld [vmem:[%s5 + $0x38] sm:$0xf]
    %v326 = vld [vmem:[%s5 + $0x3c] sm:$0xf]
    %v327 = vld [vmem:[%s6] sm:$0x1]
    %v329 = vperm.slane %v327, 0
    %v347 = vunpack.c.l.b16 %v311
    %v348 = vunpack.c.l.b16 %v312
    %v349 = vunpack.c.l.b16 %v313
    %v350 = vunpack.c.l.b16 %v314
    %v351 = vunpack.c.l.b16 %v315
    %v352 = vunpack.c.l.b16 %v316
    %v353 = vunpack.c.l.b16 %v317
    %v354 = vunpack.c.l.b16 %v318
    %v355 = vunpack.c.l.b16 %v319
    %v356 = vunpack.c.l.b16 %v320
    %v357 = vunpack.c.l.b16 %v321
    %v358 = vunpack.c.l.b16 %v322
    %v359 = vunpack.c.l.b16 %v323
    %v360 = vunpack.c.l.b16 %v324
    %v361 = vunpack.c.l.b16 %v325
    %v362 = vunpack.c.l.b16 %v326
    %v363 = vpack.c.b16 %v348, %v347
    %v364 = vpack.c.b16 %v350, %v349
    %v365 = vpack.c.b16 %v352, %v351
    %v366 = vpack.c.b16 %v354, %v353
    %v367 = vpack.c.b16 %v356, %v355
    %v368 = vpack.c.b16 %v358, %v357
    %v369 = vpack.c.b16 %v360, %v359
    %v370 = vpack.c.b16 %v362, %v361
    %379 = vmatpush.bf16.msra.mxu0 %v370
    %380 = vmatpush.bf16.msra.mxu0 %v369
    %381 = vmatpush.bf16.msra.mxu0 %v368
    %382 = vmatpush.bf16.msra.mxu0 %v367
    %383 = vmatpush.bf16.msra.mxu0 %v366
    %384 = vmatpush.bf16.msra.mxu0 %v365
    %385 = vmatpush.bf16.msra.mxu0 %v364
    %386 = vmatpush.bf16.msra.mxu0 %v363
    %387 = vmatmul.bf16.gmra.mxu0 %v303
    %v388 = vpop.f32.mrf.mxu0
    %v389 = vadd.f32 %v329, %v388
    %v390 = vpop.f32.mrf.mxu0
    %v391 = vadd.f32 %v329, %v390
    %392 = vmatmul.bf16.gmra.mxu0 %v304
    %v393 = vpop.f32.mrf.mxu0
    %v394 = vadd.f32 %v329, %v393
    %v395 = vpop.f32.mrf.mxu0
    %v396 = vadd.f32 %v329, %v395
    %397 = vmatmul.bf16.gmra.mxu0 %v305
    %v398 = vpop.f32.mrf.mxu0
    %v399 = vadd.f32 %v329, %v398
    %v400 = vpop.f32.mrf.mxu0
    %v401 = vadd.f32 %v329, %v400
    %402 = vmatmul.bf16.gmra.mxu0 %v306
    %v403 = vpop.f32.mrf.mxu0
    %v404 = vadd.f32 %v329, %v403
    %v405 = vpop.f32.mrf.mxu0
    %v406 = vadd.f32 %v329, %v405
    %407 = vmatmul.bf16.gmra.mxu0 %v307
    %v408 = vpop.f32.mrf.mxu0
    %v409 = vadd.f32 %v329, %v408
    %v410 = vpop.f32.mrf.mxu0
    %v411 = vadd.f32 %v329, %v410
    %412 = vmatmul.bf16.gmra.mxu0 %v308
    %v413 = vpop.f32.mrf.mxu0
    %v414 = vadd.f32 %v329, %v413
    %v415 = vpop.f32.mrf.mxu0
    %v416 = vadd.f32 %v329, %v415
    %417 = vmatmul.bf16.gmra.mxu0 %v309
    %v418 = vpop.f32.mrf.mxu0
    %v419 = vadd.f32 %v329, %v418
    %v420 = vpop.f32.mrf.mxu0
    %v421 = vadd.f32 %v329, %v420
    %422 = vmatmul.bf16.gmra.mxu0 %v310
    %v423 = vpop.f32.mrf.mxu0
    %v424 = vadd.f32 %v329, %v423
    %v425 = vpop.f32.mrf.mxu0
    %v426 = vadd.f32 %v329, %v425
    %427 = vdwg.mxu0
    %v428 = vlaneseq
    %v429 = vand.u32 %v428, 127
    %vm430 = vcmp.ge.s32.totalorder %v429, 16
    %vm431 = vcmp.gt.f32.partialorder %v389, 20.0
    %vm432 = vcmp.gt.f32.partialorder %v391, 20.0
    %vm433 = vcmp.gt.f32.partialorder %v394, 20.0
    %vm434 = vcmp.gt.f32.partialorder %v396, 20.0
    %vm435 = vcmp.gt.f32.partialorder %v399, 20.0
    %vm436 = vcmp.gt.f32.partialorder %v401, 20.0
    %vm437 = vcmp.gt.f32.partialorder %v404, 20.0
    %vm438 = vcmp.gt.f32.partialorder %v406, 20.0
    %vm439 = vcmp.gt.f32.partialorder %v409, 20.0
    %vm440 = vcmp.gt.f32.partialorder %v411, 20.0
    %vm441 = vcmp.gt.f32.partialorder %v414, 20.0
    %vm442 = vcmp.gt.f32.partialorder %v416, 20.0
    %vm443 = vcmp.gt.f32.partialorder %v419, 20.0
    %vm444 = vcmp.gt.f32.partialorder %v421, 20.0
    %vm445 = vcmp.gt.f32.partialorder %v424, 20.0
    %vm446 = vcmp.gt.f32.partialorder %v426, 20.0
    %v447 = vmin.f32 %v389, 20.0
    %v448 = vmin.f32 %v391, 20.0
    %v449 = vmin.f32 %v394, 20.0
    %v450 = vmin.f32 %v396, 20.0
    %v451 = vmin.f32 %v399, 20.0
    %v452 = vmin.f32 %v401, 20.0
    %v453 = vmin.f32 %v404, 20.0
    %v454 = vmin.f32 %v406, 20.0
    %v455 = vmin.f32 %v409, 20.0
    %v456 = vmin.f32 %v411, 20.0
    %v457 = vmin.f32 %v414, 20.0
    %v458 = vmin.f32 %v416, 20.0
    %v459 = vmin.f32 %v419, 20.0
    %v460 = vmin.f32 %v421, 20.0
    %v461 = vmin.f32 %v424, 20.0
    %v462 = vmin.f32 %v426, 20.0
    %v463 = vmul.f32 %v447, 1.442695
    %v464 = vpow.pop %v463
    %v465 = vmul.f32 %v448, 1.442695
    %v466 = vpow.pop %v465
    %v467 = vmul.f32 %v449, 1.442695
    %v468 = vpow.pop %v467
    %v469 = vmul.f32 %v450, 1.442695
    %v470 = vpow.pop %v469
    %v471 = vmul.f32 %v451, 1.442695
    %v472 = vpow.pop %v471
    %v473 = vmul.f32 %v452, 1.442695
    %v474 = vpow.pop %v473
    %v475 = vmul.f32 %v453, 1.442695
    %v476 = vpow.pop %v475
    %v477 = vmul.f32 %v454, 1.442695
    %v478 = vpow.pop %v477
    %v479 = vmul.f32 %v455, 1.442695
    %v480 = vpow.pop %v479
    %v481 = vmul.f32 %v456, 1.442695
    %v482 = vpow.pop %v481
    %v483 = vmul.f32 %v457, 1.442695
    %v484 = vpow.pop %v483
    %v485 = vmul.f32 %v458, 1.442695
    %v486 = vpow.pop %v485
    %v487 = vmul.f32 %v459, 1.442695
    %v488 = vpow.pop %v487
    %v489 = vmul.f32 %v460, 1.442695
    %v490 = vpow.pop %v489
    %v491 = vmul.f32 %v461, 1.442695
    %v492 = vpow.pop %v491
    %v493 = vmul.f32 %v462, 1.442695
    %v494 = vpow.pop %v493
    %v495 = vadd.f32 %v464, 1.0
    %v496 = vlog2.pop %v495
    %v497 = vmul.f32 %v496, 0.6931472
    %v498 = vmul.f32 -0.5, %v464
    %v499 = vadd.f32 %v498, 1.0
    %v500 = vmul.f32 %v499, %v464
    %v501 = vand.u32 2147483647, %v464
    %vm502 = vcmp.lt.f32.partialorder %v501, 0.0004427343
    %v503 = vsel %vm502, %v500, %v497
    %v504 = vadd.f32 %v466, 1.0
    %v505 = vlog2.pop %v504
    %v506 = vmul.f32 %v505, 0.6931472
    %v507 = vmul.f32 -0.5, %v466
    %v508 = vadd.f32 %v507, 1.0
    %v509 = vmul.f32 %v508, %v466
    %v510 = vand.u32 2147483647, %v466
    %vm511 = vcmp.lt.f32.partialorder %v510, 0.0004427343
    %v512 = vsel %vm511, %v509, %v506
    %v513 = vadd.f32 %v468, 1.0
    %v514 = vlog2.pop %v513
    %v515 = vmul.f32 %v514, 0.6931472
    %v516 = vmul.f32 -0.5, %v468
    %v517 = vadd.f32 %v516, 1.0
    %v518 = vmul.f32 %v517, %v468
    %v519 = vand.u32 2147483647, %v468
    %vm520 = vcmp.lt.f32.partialorder %v519, 0.0004427343
    %v521 = vsel %vm520, %v518, %v515
    %v522 = vadd.f32 %v470, 1.0
    %v523 = vlog2.pop %v522
    %v524 = vmul.f32 %v523, 0.6931472
    %v525 = vmul.f32 -0.5, %v470
    %v526 = vadd.f32 %v525, 1.0
    %v527 = vmul.f32 %v526, %v470
    %v528 = vand.u32 2147483647, %v470
    %vm529 = vcmp.lt.f32.partialorder %v528, 0.0004427343
    %v530 = vsel %vm529, %v527, %v524
    %v531 = vadd.f32 %v472, 1.0
    %v532 = vlog2.pop %v531
    %v533 = vmul.f32 %v532, 0.6931472
    %v534 = vmul.f32 -0.5, %v472
    %v535 = vadd.f32 %v534, 1.0
    %v536 = vmul.f32 %v535, %v472
    %v537 = vand.u32 2147483647, %v472
    %vm538 = vcmp.lt.f32.partialorder %v537, 0.0004427343
    %v539 = vsel %vm538, %v536, %v533
    %v540 = vadd.f32 %v474, 1.0
    %v541 = vlog2.pop %v540
    %v542 = vmul.f32 %v541, 0.6931472
    %v543 = vmul.f32 -0.5, %v474
    %v544 = vadd.f32 %v543, 1.0
    %v545 = vmul.f32 %v544, %v474
    %v546 = vand.u32 2147483647, %v474
    %vm547 = vcmp.lt.f32.partialorder %v546, 0.0004427343
    %v548 = vsel %vm547, %v545, %v542
    %v549 = vadd.f32 %v476, 1.0
    %v550 = vlog2.pop %v549
    %v551 = vmul.f32 %v550, 0.6931472
    %v552 = vmul.f32 -0.5, %v476
    %v553 = vadd.f32 %v552, 1.0
    %v554 = vmul.f32 %v553, %v476
    %v555 = vand.u32 2147483647, %v476
    %vm556 = vcmp.lt.f32.partialorder %v555, 0.0004427343
    %v557 = vsel %vm556, %v554, %v551
    %v558 = vadd.f32 %v478, 1.0
    %v559 = vlog2.pop %v558
    %v560 = vmul.f32 %v559, 0.6931472
    %v561 = vmul.f32 -0.5, %v478
    %v562 = vadd.f32 %v561, 1.0
    %v563 = vmul.f32 %v562, %v478
    %v564 = vand.u32 2147483647, %v478
    %vm565 = vcmp.lt.f32.partialorder %v564, 0.0004427343
    %v566 = vsel %vm565, %v563, %v560
    %v567 = vadd.f32 %v480, 1.0
    %v568 = vlog2.pop %v567
    %v569 = vmul.f32 %v568, 0.6931472
    %v570 = vmul.f32 -0.5, %v480
    %v571 = vadd.f32 %v570, 1.0
    %v572 = vmul.f32 %v571, %v480
    %v573 = vand.u32 2147483647, %v480
    %vm574 = vcmp.lt.f32.partialorder %v573, 0.0004427343
    %v575 = vsel %vm574, %v572, %v569
    %v576 = vadd.f32 %v482, 1.0
    %v577 = vlog2.pop %v576
    %v578 = vmul.f32 %v577, 0.6931472
    %v579 = vmul.f32 -0.5, %v482
    %v580 = vadd.f32 %v579, 1.0
    %v581 = vmul.f32 %v580, %v482
    %v582 = vand.u32 2147483647, %v482
    %vm583 = vcmp.lt.f32.partialorder %v582, 0.0004427343
    %v584 = vsel %vm583, %v581, %v578
    %v585 = vadd.f32 %v484, 1.0
    %v586 = vlog2.pop %v585
    %v587 = vmul.f32 %v586, 0.6931472
    %v588 = vmul.f32 -0.5, %v484
    %v589 = vadd.f32 %v588, 1.0
    %v590 = vmul.f32 %v589, %v484
    %v591 = vand.u32 2147483647, %v484
    %vm592 = vcmp.lt.f32.partialorder %v591, 0.0004427343
    %v593 = vsel %vm592, %v590, %v587
    %v594 = vadd.f32 %v486, 1.0
    %v595 = vlog2.pop %v594
    %v596 = vmul.f32 %v595, 0.6931472
    %v597 = vmul.f32 -0.5, %v486
    %v598 = vadd.f32 %v597, 1.0
    %v599 = vmul.f32 %v598, %v486
    %v600 = vand.u32 2147483647, %v486
    %vm601 = vcmp.lt.f32.partialorder %v600, 0.0004427343
    %v602 = vsel %vm601, %v599, %v596
    %v603 = vadd.f32 %v488, 1.0
    %v604 = vlog2.pop %v603
    %v605 = vmul.f32 %v604, 0.6931472
    %v606 = vmul.f32 -0.5, %v488
    %v607 = vadd.f32 %v606, 1.0
    %v608 = vmul.f32 %v607, %v488
    %v609 = vand.u32 2147483647, %v488
    %vm610 = vcmp.lt.f32.partialorder %v609, 0.0004427343
    %v611 = vsel %vm610, %v608, %v605
    %v612 = vadd.f32 %v490, 1.0
    %v613 = vlog2.pop %v612
    %v614 = vmul.f32 %v613, 0.6931472
    %v615 = vmul.f32 -0.5, %v490
    %v616 = vadd.f32 %v615, 1.0
    %v617 = vmul.f32 %v616, %v490
    %v618 = vand.u32 2147483647, %v490
    %vm619 = vcmp.lt.f32.partialorder %v618, 0.0004427343
    %v620 = vsel %vm619, %v617, %v614
    %v621 = vadd.f32 %v492, 1.0
    %v622 = vlog2.pop %v621
    %v623 = vmul.f32 %v622, 0.6931472
    %v624 = vmul.f32 -0.5, %v492
    %v625 = vadd.f32 %v624, 1.0
    %v626 = vmul.f32 %v625, %v492
    %v627 = vand.u32 2147483647, %v492
    %vm628 = vcmp.lt.f32.partialorder %v627, 0.0004427343
    %v629 = vsel %vm628, %v626, %v623
    %v630 = vadd.f32 %v494, 1.0
    %v631 = vlog2.pop %v630
    %v632 = vmul.f32 %v631, 0.6931472
    %v633 = vmul.f32 -0.5, %v494
    %v634 = vadd.f32 %v633, 1.0
    %v635 = vmul.f32 %v634, %v494
    %v636 = vand.u32 2147483647, %v494
    %vm637 = vcmp.lt.f32.partialorder %v636, 0.0004427343
    %v638 = vsel %vm637, %v635, %v632
    %v639 = vsel %vm431, %v389, %v503
    %v640 = vsel %vm432, %v391, %v512
    %v641 = vsel %vm433, %v394, %v521
    %v642 = vsel %vm434, %v396, %v530
    %v643 = vsel %vm435, %v399, %v539
    %v644 = vsel %vm436, %v401, %v548
    %v645 = vsel %vm437, %v404, %v557
    %v646 = vsel %vm438, %v406, %v566
    %v647 = vsel %vm439, %v409, %v575
    %v648 = vsel %vm440, %v411, %v584
    %v649 = vsel %vm441, %v414, %v593
    %v650 = vsel %vm442, %v416, %v602
    %v651 = vsel %vm443, %v419, %v611
    %v652 = vsel %vm444, %v421, %v620
    %v653 = vsel %vm445, %v424, %v629
    %v654 = vsel %vm446, %v426, %v638
    %v655 = vsel %vm430, %v639, %v389
    %v656 = vsel %vm430, %v640, %v391
    %v657 = vsel %vm430, %v641, %v394
    %v658 = vsel %vm430, %v642, %v396
    %v659 = vsel %vm430, %v643, %v399
    %v660 = vsel %vm430, %v644, %v401
    %v661 = vsel %vm430, %v645, %v404
    %v662 = vsel %vm430, %v646, %v406
    %v663 = vsel %vm430, %v647, %v409
    %v664 = vsel %vm430, %v648, %v411
    %v665 = vsel %vm430, %v649, %v414
    %v666 = vsel %vm430, %v650, %v416
    %v667 = vsel %vm430, %v651, %v419
    %v668 = vsel %vm430, %v652, %v421
    %v669 = vsel %vm430, %v653, %v424
    %v670 = vsel %vm430, %v654, %v426
    %671 = vst [vmem:[#allocation2] sm:$0xff] %v655
    %672 = vst [vmem:[#allocation2 + $0x8] sm:$0xff] %v656
    %673 = vst [vmem:[#allocation2 + $0x10] sm:$0xff] %v657
    %674 = vst [vmem:[#allocation2 + $0x18] sm:$0xff] %v658
    %675 = vst [vmem:[#allocation2 + $0x20] sm:$0xff] %v659
    %676 = vst [vmem:[#allocation2 + $0x28] sm:$0xff] %v660
    %677 = vst [vmem:[#allocation2 + $0x30] sm:$0xff] %v661
    %678 = vst [vmem:[#allocation2 + $0x38] sm:$0xff] %v662
    %679 = vst [vmem:[#allocation2 + $0x40] sm:$0xff] %v663
    %680 = vst [vmem:[#allocation2 + $0x48] sm:$0xff] %v664
    %681 = vst [vmem:[#allocation2 + $0x50] sm:$0xff] %v665
    %682 = vst [vmem:[#allocation2 + $0x58] sm:$0xff] %v666
    %683 = vst [vmem:[#allocation2 + $0x60] sm:$0xff] %v667
    %684 = vst [vmem:[#allocation2 + $0x68] sm:$0xff] %v668
    %685 = vst [vmem:[#allocation2 + $0x70] sm:$0xff] %v669
    %686 = vst [vmem:[#allocation2 + $0x78] sm:$0xff] %v670
    // Predicated region
    $region30: #{tpu_custom_call.1} parent=1 // pred_check
      _
    $region31: #{tpu_custom_call.1} parent=1 // pred_check_branch
      %688 = sbr.rel (0) target = $region33
    $region32: #{tpu_custom_call.1} parent=1 // pred_region
      %690 = vsyncadd [#allocation3], 0
      %s691 = sshll.u32 [#allocation2], 4
      %s692 = int_to_ptr.vmem [resolvable:$true] %s691
      %s693 = sshll.u32 %s7, 4
      %s694 = int_to_ptr.hbm [resolvable:$true] %s693
      %699 = dma.vmem_to_hbm [thread:$0]  %s692, 2048, %s694, [#allocation3], 128, 128, 8
    $region33: #{tpu_custom_call.1} parent=1 // pred_fallthru
      _
    // Predicated region
    $region34: #{tpu_custom_call.1} parent=1 // pred_check
      _
    $region35: #{tpu_custom_call.1} parent=1 // pred_check_branch
      %701 = sbr.rel (0) target = $region37
    $region36: #{tpu_custom_call.1} parent=1 // pred_region
      %703 = dma.done [#allocation3], 2048
    $region37: #{tpu_custom_call.1} parent=1 // pred_fallthru
      _
    %704 = vsyncpa [#allocation3], 1

</llo_original>
